<compile_context>
chip_gen: v5e
topology: v5e:2x2
jax: 0.10.0
libtpu: 0.0.40
codegen_flags: <defaults>
</compile_context>

<pallas_src>
import functools

import jax
import jax.numpy as jnp
import numpy as np
from jax.experimental import pallas as pl
from jax.experimental.pallas import tpu as pltpu

_SUB = 8      # sublane tile
_LANES = 128  # lane tile


def _sepconv_fused_kernel(wc_ref, x_ref, o_ref, *, shifts, lw):
    # wc_ref: (OC, T*CP)  fused weights  Wc[oc, t*CP + c] = pw[oc, c] * dw[c, t]
    # x_ref : (CP, LW)    batch-fused, channel-padded, lane-dense flattened images
    # o_ref : (OC, LW)    single lane-dense output slab
    x = x_ref[...]                                        # (CP, LW), f32

    # Tap-stacked MXU operand: block t holds x rolled so that lane l reads x[:, l + s_t].
    # (pltpu.roll == jnp.roll, so shift = lw - s_t gives result[l] = x[(l + s_t) % lw].)
    # Wrap-around garbage only reaches lanes whose outputs the wrapper discards.
    blocks = []
    for s in shifts:
        blocks.append(x if s == 0 else pltpu.roll(x, shift=lw - s, axis=1))
    stack = jnp.concatenate(blocks, axis=0)               # (T*CP, LW), tile-aligned concat

    # Depthwise + pointwise fused into one K = T*CP MXU contraction, f32 accumulate.
    out = jnp.dot(wc_ref[...], stack, preferred_element_type=jnp.float32)  # (OC, LW)
    o_ref[...] = out.astype(o_ref.dtype)                  # unmasked full-vreg store


def separable_conv2d(x, dw_weight, pw_weight):
    """x: (N, C, H, W); dw_weight: (C, 1, KH, KW); pw_weight: (OC, C, 1, 1)."""
    N, C, H, W = x.shape
    KH, KW = dw_weight.shape[2], dw_weight.shape[3]
    OC = pw_weight.shape[0]
    T = KH * KW
    OH, OW = H - KH + 1, W - KW + 1                 # padding=0, stride=1 (VALID)
    HW = H * W

    cp = pl.cdiv(C, _SUB) * _SUB                    # channels padded to sublane tile
    tw = pl.cdiv(HW, _LANES) * _LANES               # per-image lane-aligned width
    lw = N * tw                                     # whole batch folded onto lanes

    # Flattened tap shifts: x[c, i+kh, j+kw] == x_flat[c, (i*W + j) + kh*W + kw].
    shifts = tuple(kh * W + kw for kh in range(KH) for kw in range(KW))

    # ---- layout plumbing only (no FLOPs): channel pad + batch-on-lane fold ----
    xf = x.reshape(N, C, HW).astype(jnp.float32)
    xf = jnp.pad(xf, ((0, 0), (0, cp - C), (0, tw - HW)))
    xf = xf.transpose(1, 0, 2).reshape(cp, lw)      # xf[c, n*tw + p] = x[n, c, p//W, p%W]

    # ---- fused depthwise*pointwise weights: Wc[oc, t*CP + c] = pw[oc,c] * dw[c,t] ----
    dwp = jnp.pad(dw_weight.reshape(C, T).astype(jnp.float32), ((0, cp - C), (0, 0)))
    pwp = jnp.pad(pw_weight.reshape(OC, C).astype(jnp.float32), ((0, 0), (0, cp - C)))
    wc = (pwp[:, None, :] * dwp.T[None, :, :]).reshape(OC, T * cp)

    kernel = functools.partial(_sepconv_fused_kernel, shifts=shifts, lw=lw)

    cost = pl.CostEstimate(
        flops=int(2 * N * OC * C * T * OH * OW),
        transcendentals=0,
        bytes_accessed=int((xf.size + wc.size + OC * lw) * 4),
    )

    out_fused = pl.pallas_call(
        kernel,
        out_shape=jax.ShapeDtypeStruct((OC, lw), x.dtype),
        grid=(1,),                                   # one fat step: batch lives on lanes
        in_specs=[
            pl.BlockSpec((OC, T * cp), lambda i: (0, 0)),   # fused weights (VMEM)
            pl.BlockSpec((cp, lw), lambda i: (0, 0)),       # batch-fused images (VMEM)
        ],
        out_specs=pl.BlockSpec((OC, lw), lambda i: (0, 0)),
        compiler_params=pltpu.CompilerParams(
            dimension_semantics=("arbitrary",)),
        cost_estimate=cost,
    )(wc, xf)

    # ---- un-fold and drop padded / out-of-window positions (layout plumbing only) ----
    out = out_fused.reshape(OC, N, tw).transpose(1, 0, 2)[:, :, :HW]
    out = out.reshape(N, OC, H, W)[:, :, :OH, :OW]
    return out


def _reference(x, dw_weight, pw_weight):
    C = x.shape[1]
    d = jax.lax.conv_general_dilated(
        x, dw_weight, window_strides=(1, 1), padding="VALID",
        dimension_numbers=("NCHW", "OIHW", "NCHW"), feature_group_count=C)
    return jax.lax.conv_general_dilated(
        d, pw_weight, window_strides=(1, 1), padding="VALID",
        dimension_numbers=("NCHW", "OIHW", "NCHW"))


if __name__ == "__main__":
    # Small shapes consistent with the module: batch=2, in_channels=4,
    # out_channels=8, spatial 16x16, kernel_size=(3, 3), bias=False.
    N, C, H, W = 2, 4, 16, 16
    OC, KH, KW = 8, 3, 3

    key = jax.random.PRNGKey(0)
    kx, kdw, kpw = jax.random.split(key, 3)
    x = jax.random.normal(kx, (N, C, H, W), dtype=jnp.float32)
    # nn.Conv2d(in, in, k, groups=in, bias=False) weight: (C, 1, KH, KW)
    dw_weight = jax.random.normal(kdw, (C, 1, KH, KW), dtype=jnp.float32) * 0.1
    # nn.Conv2d(in, out, (1, 1), bias=False) weight: (OC, C, 1, 1)
    pw_weight = jax.random.normal(kpw, (OC, C, 1, 1), dtype=jnp.float32) * 0.1

    out = jax.block_until_ready(separable_conv2d(x, dw_weight, pw_weight))
    ref = jax.block_until_ready(_reference(x, dw_weight, pw_weight))
    np.testing.assert_allclose(np.asarray(out), np.asarray(ref),
                               rtol=1e-4, atol=1e-5)
    print("KERNEL_OK")
</pallas_src>

<mosaic_0001>
module attributes {stable_mosaic.version = 11 : i64} {
  func.func @_sepconv_fused_kernel(%arg0: i32, %arg1: memref<8x72xf32, #tpu.memory_space<vmem>>, %arg2: memref<8x512xf32, #tpu.memory_space<vmem>>, %arg3: memref<8x512xf32, #tpu.memory_space<vmem>>) attributes {dimension_semantics = [#tpu.dimension_semantics<arbitrary>], iteration_bounds = array<i64: 1>, scalar_prefetch = 0 : i64, scratch_operands = 0 : i64, tpu.core_type = #tpu.core_type<tc>, window_params = [{pipeline_mode = #tpu.pipeline_mode<synchronous>, transform_indices = @transform_0, window_bounds = array<i64: 8, 72>}, {pipeline_mode = #tpu.pipeline_mode<synchronous>, transform_indices = @transform_1, window_bounds = array<i64: 8, 512>}, {pipeline_mode = #tpu.pipeline_mode<synchronous>, transform_indices = @transform_2, window_bounds = array<i64: 8, 512>}]} {
    %c0 = arith.constant 0 : index
    %c0_0 = arith.constant 0 : index
    %0 = vector.load %arg2[%c0, %c0_0] : memref<8x512xf32, #tpu.memory_space<vmem>>, vector<8x512xf32>
    %c511_i32 = arith.constant 511 : i32
    %1 = tpu.dynamic_rotate %0 by %c511_i32 dim 1 : vector<8x512xf32>, i32 -> vector<8x512xf32>
    %c510_i32 = arith.constant 510 : i32
    %2 = tpu.dynamic_rotate %0 by %c510_i32 dim 1 : vector<8x512xf32>, i32 -> vector<8x512xf32>
    %c496_i32 = arith.constant 496 : i32
    %3 = tpu.dynamic_rotate %0 by %c496_i32 dim 1 : vector<8x512xf32>, i32 -> vector<8x512xf32>
    %c495_i32 = arith.constant 495 : i32
    %4 = tpu.dynamic_rotate %0 by %c495_i32 dim 1 : vector<8x512xf32>, i32 -> vector<8x512xf32>
    %c494_i32 = arith.constant 494 : i32
    %5 = tpu.dynamic_rotate %0 by %c494_i32 dim 1 : vector<8x512xf32>, i32 -> vector<8x512xf32>
    %c480_i32 = arith.constant 480 : i32
    %6 = tpu.dynamic_rotate %0 by %c480_i32 dim 1 : vector<8x512xf32>, i32 -> vector<8x512xf32>
    %c479_i32 = arith.constant 479 : i32
    %7 = tpu.dynamic_rotate %0 by %c479_i32 dim 1 : vector<8x512xf32>, i32 -> vector<8x512xf32>
    %c478_i32 = arith.constant 478 : i32
    %8 = tpu.dynamic_rotate %0 by %c478_i32 dim 1 : vector<8x512xf32>, i32 -> vector<8x512xf32>
    %9 = tpu.concatenate %0, %1, %2, %3, %4, %5, %6, %7, %8 in 0 : vector<8x512xf32>, vector<8x512xf32>, vector<8x512xf32>, vector<8x512xf32>, vector<8x512xf32>, vector<8x512xf32>, vector<8x512xf32>, vector<8x512xf32>, vector<8x512xf32> -> vector<72x512xf32>
    %c0_1 = arith.constant 0 : index
    %c0_2 = arith.constant 0 : index
    %10 = vector.load %arg1[%c0_1, %c0_2] : memref<8x72xf32, #tpu.memory_space<vmem>>, vector<8x72xf32>
    %cst = arith.constant dense<0.000000e+00> : vector<8x512xf32>
    %11 = tpu.matmul %10, %9, %cst {dimension_numbers = #tpu.dot_dimension_numbers<[1], [0], [0], [1], [0, 0, 1, 1], [], []>} : vector<8x72xf32>, vector<72x512xf32>, vector<8x512xf32> -> vector<8x512xf32>
    %c0_3 = arith.constant 0 : index
    %c0_4 = arith.constant 0 : index
    %12 = vector.load %arg3[%c0_3, %c0_4] : memref<8x512xf32, #tpu.memory_space<vmem>>, vector<8x512xf32>
    tpu.vector_store %arg3[%c0_3, %c0_4], %11 {strides = array<i32>} : memref<8x512xf32, #tpu.memory_space<vmem>>, vector<8x512xf32>,
    return
  }
  func.func @transform_0(%arg0: i32) -> (i32, i32) {
    %c0_i32 = arith.constant 0 : i32
    %c0_i32_0 = arith.constant 0 : i32
    %c0_i32_1 = arith.constant 0 : i32
    return %c0_i32, %c0_i32_0 : i32, i32
  }
  func.func @transform_1(%arg0: i32) -> (i32, i32) {
    %c0_i32 = arith.constant 0 : i32
    %c0_i32_0 = arith.constant 0 : i32
    %c0_i32_1 = arith.constant 0 : i32
    return %c0_i32, %c0_i32_0 : i32, i32
  }
  func.func @transform_2(%arg0: i32) -> (i32, i32) {
    %c0_i32 = arith.constant 0 : i32
    %c0_i32_0 = arith.constant 0 : i32
    %c0_i32_1 = arith.constant 0 : i32
    return %c0_i32, %c0_i32_0 : i32, i32
  }
}

</mosaic_0001>

<llo_original>
// kernel: tpu_custom_call.1
$region0: #{tpu_custom_call.1}
  #allocation0 [shape = 'u32[]', space=smem, size = 0x4, offset = 0x4, fixed_abs, tag = 'smem constant byte address 0x4 - core index']
  #allocation1 [shape = 'u32[72,128]{1,0:T(1,128)}', space=vmem, size = 0x9000, scoped, tag = 'internal scratch']
  %s0 = inlined_call_operand.hbm [shape: f32[8,72], index: 0, kind: input, shape index: {}]
  %s1 = inlined_call_operand.hbm [shape: f32[8,512], index: 1, kind: input, shape index: {}]
  %s2 = inlined_call_operand.hbm [shape: f32[8,512], index: 2, kind: output, shape index: {}]
  %s3 = sld [smem:[#allocation0]]
  $region26: #{tpu_custom_call.1} parent=0
    _
  %s5 = ssub.s32 1, %s3
  %s6 = scalar_select 0, %s5, %s3
  $region1: #{tpu_custom_call.1} parent=0
    #allocation2 [shape = 'u8[4096]{0}', space=vmem, size = 0x1000, scoped, tag = 'input window, operand 0, single buffered']
    #allocation3 [shape = 's32[1]{0}', space=sflag, size = 0x4, scoped, tag = 'scoped memory for tpu_custom_call.1']
    #allocation4 [shape = 's32[1]{0}', space=sflag, size = 0x4, scoped, tag = 'scoped memory for tpu_custom_call.1']
    #allocation5 [shape = 'u8[16384]{0}', space=vmem, size = 0x4000, scoped, tag = 'input window, operand 1, single buffered']
    #allocation6 [shape = 's32[1]{0}', space=sflag, size = 0x4, scoped, tag = 'scoped memory for tpu_custom_call.1']
    #allocation7 [shape = 'u8[16384]{0}', space=vmem, size = 0x4000, scoped, tag = 'output window, operand 0, single buffered']
    %7 = vsyncpa [#allocation3], 0
    %8 = vsyncpa [#allocation6], 0
    %9 = vsyncpa [#allocation4], 0
    // Predicated region
    $region2: #{tpu_custom_call.1} parent=1 // pred_check
      _
    $region3: #{tpu_custom_call.1} parent=1 // pred_check_branch
      %11 = sbr.rel (0) target = $region5
    $region4: #{tpu_custom_call.1} parent=1 // pred_region
      %13 = vsyncadd [#allocation3], 0
      %s15 = sshll.u32 %s0, 4
      %s16 = int_to_ptr.hbm [resolvable:$true] %s15
      %s17 = sshll.u32 [#allocation2], 4
      %s18 = int_to_ptr.vmem [resolvable:$true] %s17
      %20 = dma.hbm_to_vmem [thread:$0]  %s16, 128, %s18, [#allocation3]
    $region5: #{tpu_custom_call.1} parent=1 // pred_fallthru
      _
    // Predicated region
    $region6: #{tpu_custom_call.1} parent=1 // pred_check
      _
    $region7: #{tpu_custom_call.1} parent=1 // pred_check_branch
      %22 = sbr.rel (0) target = $region9
    $region8: #{tpu_custom_call.1} parent=1 // pred_region
      %24 = vsyncadd [#allocation6], 0
      %s26 = sshll.u32 %s1, 4
      %s27 = int_to_ptr.hbm [resolvable:$true] %s26
      %s28 = sshll.u32 [#allocation5], 4
      %s29 = int_to_ptr.vmem [resolvable:$true] %s28
      %31 = dma.hbm_to_vmem [thread:$0]  %s27, 512, %s29, [#allocation6]
    $region9: #{tpu_custom_call.1} parent=1 // pred_fallthru
      _
    // Predicated region
    $region10: #{tpu_custom_call.1} parent=1 // pred_check
      _
    $region11: #{tpu_custom_call.1} parent=1 // pred_check_branch
      %33 = sbr.rel (0) target = $region13
    $region12: #{tpu_custom_call.1} parent=1 // pred_region
      %35 = dma.done [#allocation3], 128
    $region13: #{tpu_custom_call.1} parent=1 // pred_fallthru
      _
    // Predicated region
    $region14: #{tpu_custom_call.1} parent=1 // pred_check
      _
    $region15: #{tpu_custom_call.1} parent=1 // pred_check_branch
      %37 = sbr.rel (0) target = $region17
    $region16: #{tpu_custom_call.1} parent=1 // pred_region
      %39 = dma.done [#allocation6], 512
    $region17: #{tpu_custom_call.1} parent=1 // pred_fallthru
      _
    %v40 = vld [vmem:[#allocation5] sm:$0xff]
    %v41 = vld [vmem:[#allocation5 + $0x8] sm:$0xff]
    %v42 = vld [vmem:[#allocation5 + $0x10] sm:$0xff]
    %v43 = vld [vmem:[#allocation5 + $0x18] sm:$0xff]
    %44 = vrot.lane.b32.xlu0 %v40, 127
    %v45 = vpop.permute.xlu0 %44
    %46 = vrot.lane.b32.xlu0 %v41, 127
    %v47 = vpop.permute.xlu0 %46
    %48 = vrot.lane.b32.xlu0 %v42, 127
    %v49 = vpop.permute.xlu0 %48
    %50 = vrot.lane.b32.xlu0 %v43, 127
    %v51 = vpop.permute.xlu0 %50
    %v52 = vlaneseq
    %v53 = vand.u32 %v52, 127
    %vm54 = vcmp.lt.s32.totalorder %v53, 127
    %v55 = vsel %vm54, %v49, %v51
    %v56 = vsel %vm54, %v47, %v49
    %v57 = vsel %vm54, %v45, %v47
    %v58 = vsel %vm54, %v51, %v45
    %59 = vrot.lane.b32.xlu0 %v40, 126
    %v60 = vpop.permute.xlu0 %59
    %61 = vrot.lane.b32.xlu0 %v41, 126
    %v62 = vpop.permute.xlu0 %61
    %63 = vrot.lane.b32.xlu0 %v42, 126
    %v64 = vpop.permute.xlu0 %63
    %65 = vrot.lane.b32.xlu0 %v43, 126
    %v66 = vpop.permute.xlu0 %65
    %vm67 = vcmp.lt.s32.totalorder %v53, 126
    %v68 = vsel %vm67, %v64, %v66
    %v69 = vsel %vm67, %v62, %v64
    %v70 = vsel %vm67, %v60, %v62
    %v71 = vsel %vm67, %v66, %v60
    %72 = vrot.lane.b32.xlu0 %v40, 112
    %v73 = vpop.permute.xlu0 %72
    %74 = vrot.lane.b32.xlu0 %v41, 112
    %v75 = vpop.permute.xlu0 %74
    %76 = vrot.lane.b32.xlu0 %v42, 112
    %v77 = vpop.permute.xlu0 %76
    %78 = vrot.lane.b32.xlu0 %v43, 112
    %v79 = vpop.permute.xlu0 %78
    %vm80 = vcmp.lt.s32.totalorder %v53, 112
    %v81 = vsel %vm80, %v77, %v79
    %v82 = vsel %vm80, %v75, %v77
    %v83 = vsel %vm80, %v73, %v75
    %v84 = vsel %vm80, %v79, %v73
    %85 = vrot.lane.b32.xlu0 %v40, 111
    %v86 = vpop.permute.xlu0 %85
    %87 = vrot.lane.b32.xlu0 %v41, 111
    %v88 = vpop.permute.xlu0 %87
    %89 = vrot.lane.b32.xlu0 %v42, 111
    %v90 = vpop.permute.xlu0 %89
    %91 = vrot.lane.b32.xlu0 %v43, 111
    %v92 = vpop.permute.xlu0 %91
    %vm93 = vcmp.lt.s32.totalorder %v53, 111
    %v94 = vsel %vm93, %v90, %v92
    %v95 = vsel %vm93, %v88, %v90
    %v96 = vsel %vm93, %v86, %v88
    %v97 = vsel %vm93, %v92, %v86
    %98 = vrot.lane.b32.xlu0 %v40, 110
    %v99 = vpop.permute.xlu0 %98
    %100 = vrot.lane.b32.xlu0 %v41, 110
    %v101 = vpop.permute.xlu0 %100
    %102 = vrot.lane.b32.xlu0 %v42, 110
    %v103 = vpop.permute.xlu0 %102
    %104 = vrot.lane.b32.xlu0 %v43, 110
    %v105 = vpop.permute.xlu0 %104
    %vm106 = vcmp.lt.s32.totalorder %v53, 110
    %v107 = vsel %vm106, %v103, %v105
    %v108 = vsel %vm106, %v101, %v103
    %v109 = vsel %vm106, %v99, %v101
    %v110 = vsel %vm106, %v105, %v99
    %111 = vrot.lane.b32.xlu0 %v40, 96
    %v112 = vpop.permute.xlu0 %111
    %113 = vrot.lane.b32.xlu0 %v41, 96
    %v114 = vpop.permute.xlu0 %113
    %115 = vrot.lane.b32.xlu0 %v42, 96
    %v116 = vpop.permute.xlu0 %115
    %117 = vrot.lane.b32.xlu0 %v43, 96
    %v118 = vpop.permute.xlu0 %117
    %vm119 = vcmp.lt.s32.totalorder %v53, 96
    %v120 = vsel %vm119, %v116, %v118
    %v121 = vsel %vm119, %v114, %v116
    %v122 = vsel %vm119, %v112, %v114
    %v123 = vsel %vm119, %v118, %v112
    %124 = vrot.lane.b32.xlu0 %v40, 95
    %v125 = vpop.permute.xlu0 %124
    %126 = vrot.lane.b32.xlu0 %v41, 95
    %v127 = vpop.permute.xlu0 %126
    %128 = vrot.lane.b32.xlu0 %v42, 95
    %v129 = vpop.permute.xlu0 %128
    %130 = vrot.lane.b32.xlu0 %v43, 95
    %v131 = vpop.permute.xlu0 %130
    %vm132 = vcmp.lt.s32.totalorder %v53, 95
    %v133 = vsel %vm132, %v129, %v131
    %v134 = vsel %vm132, %v127, %v129
    %v135 = vsel %vm132, %v125, %v127
    %v136 = vsel %vm132, %v131, %v125
    %137 = vrot.lane.b32.xlu0 %v40, 94
    %v138 = vpop.permute.xlu0 %137
    %139 = vrot.lane.b32.xlu0 %v41, 94
    %v140 = vpop.permute.xlu0 %139
    %141 = vrot.lane.b32.xlu0 %v42, 94
    %v142 = vpop.permute.xlu0 %141
    %143 = vrot.lane.b32.xlu0 %v43, 94
    %v144 = vpop.permute.xlu0 %143
    %vm145 = vcmp.lt.s32.totalorder %v53, 94
    %v146 = vsel %vm145, %v142, %v144
    %v147 = vsel %vm145, %v140, %v142
    %v148 = vsel %vm145, %v138, %v140
    %v149 = vsel %vm145, %v144, %v138
    %v150 = vld [vmem:[#allocation2] sm:$0xff]
    %vm151 = vcmask 588800
    %v153 = vsel %vm151, %v150, 0
    %155 = vmatpush.msra.mxu0 0.0
    %156 = vmatpush.msra.mxu0 0.0
    %157 = vmatpush.msra.mxu0 0.0
    %158 = vmatpush.msra.mxu0 0.0
    %159 = vmatpush.msra.mxu0 0.0
    %160 = vmatpush.msra.mxu0 0.0
    %161 = vmatpush.msra.mxu0 0.0
    %162 = vmatpush.msra.mxu0 %v148
    %163 = vmatpush.msra.mxu0 %v135
    %164 = vmatpush.msra.mxu0 %v122
    %165 = vmatpush.msra.mxu0 %v109
    %166 = vmatpush.msra.mxu0 %v96
    %167 = vmatpush.msra.mxu0 %v83
    %168 = vmatpush.msra.mxu0 %v70
    %169 = vmatpush.msra.mxu0 %v57
    %170 = vmatpush.msra.mxu0 %v40
    %171 = vmatmul.f32.gmra.mxu0 %v153
    %v172 = vpop.f32.mrf.mxu0
    %v173 = vadd.f32 0.0, %v172
    %174 = vdwg.mxu0
    %175 = vmatpush.msra.mxu0 0.0
    %176 = vmatpush.msra.mxu0 0.0
    %177 = vmatpush.msra.mxu0 0.0
    %178 = vmatpush.msra.mxu0 0.0
    %179 = vmatpush.msra.mxu0 0.0
    %180 = vmatpush.msra.mxu0 0.0
    %181 = vmatpush.msra.mxu0 0.0
    %182 = vmatpush.msra.mxu0 %v147
    %183 = vmatpush.msra.mxu0 %v134
    %184 = vmatpush.msra.mxu0 %v121
    %185 = vmatpush.msra.mxu0 %v108
    %186 = vmatpush.msra.mxu0 %v95
    %187 = vmatpush.msra.mxu0 %v82
    %188 = vmatpush.msra.mxu0 %v69
    %189 = vmatpush.msra.mxu0 %v56
    %190 = vmatpush.msra.mxu0 %v41
    %191 = vmatmul.f32.gmra.mxu0 %v153
    %v192 = vpop.f32.mrf.mxu0
    %v193 = vadd.f32 0.0, %v192
    %194 = vdwg.mxu0
    %195 = vmatpush.msra.mxu0 0.0
    %196 = vmatpush.msra.mxu0 0.0
    %197 = vmatpush.msra.mxu0 0.0
    %198 = vmatpush.msra.mxu0 0.0
    %199 = vmatpush.msra.mxu0 0.0
    %200 = vmatpush.msra.mxu0 0.0
    %201 = vmatpush.msra.mxu0 0.0
    %202 = vmatpush.msra.mxu0 %v146
    %203 = vmatpush.msra.mxu0 %v133
    %204 = vmatpush.msra.mxu0 %v120
    %205 = vmatpush.msra.mxu0 %v107
    %206 = vmatpush.msra.mxu0 %v94
    %207 = vmatpush.msra.mxu0 %v81
    %208 = vmatpush.msra.mxu0 %v68
    %209 = vmatpush.msra.mxu0 %v55
    %210 = vmatpush.msra.mxu0 %v42
    %211 = vmatmul.f32.gmra.mxu0 %v153
    %v212 = vpop.f32.mrf.mxu0
    %v213 = vadd.f32 0.0, %v212
    %214 = vdwg.mxu0
    %215 = vmatpush.msra.mxu0 0.0
    %216 = vmatpush.msra.mxu0 0.0
    %217 = vmatpush.msra.mxu0 0.0
    %218 = vmatpush.msra.mxu0 0.0
    %219 = vmatpush.msra.mxu0 0.0
    %220 = vmatpush.msra.mxu0 0.0
    %221 = vmatpush.msra.mxu0 0.0
    %222 = vmatpush.msra.mxu0 %v149
    %223 = vmatpush.msra.mxu0 %v136
    %224 = vmatpush.msra.mxu0 %v123
    %225 = vmatpush.msra.mxu0 %v110
    %226 = vmatpush.msra.mxu0 %v97
    %227 = vmatpush.msra.mxu0 %v84
    %228 = vmatpush.msra.mxu0 %v71
    %229 = vmatpush.msra.mxu0 %v58
    %230 = vmatpush.msra.mxu0 %v43
    %231 = vmatmul.f32.gmra.mxu0 %v153
    %v232 = vpop.f32.mrf.mxu0
    %v233 = vadd.f32 0.0, %v232
    %234 = vdwg.mxu0
    %235 = vst [vmem:[#allocation7] sm:$0xff] %v173
    %236 = vst [vmem:[#allocation7 + $0x8] sm:$0xff] %v193
    %237 = vst [vmem:[#allocation7 + $0x10] sm:$0xff] %v213
    %238 = vst [vmem:[#allocation7 + $0x18] sm:$0xff] %v233
    // Predicated region
    $region18: #{tpu_custom_call.1} parent=1 // pred_check
      _
    $region19: #{tpu_custom_call.1} parent=1 // pred_check_branch
      %240 = sbr.rel (0) target = $region21
    $region20: #{tpu_custom_call.1} parent=1 // pred_region
      %242 = vsyncadd [#allocation4], 0
      %s244 = sshll.u32 [#allocation7], 4
      %s245 = int_to_ptr.vmem [resolvable:$true] %s244
      %s246 = sshll.u32 %s2, 4
      %s247 = int_to_ptr.hbm [resolvable:$true] %s246
      %249 = dma.vmem_to_hbm [thread:$0]  %s245, 512, %s247, [#allocation4]
    $region21: #{tpu_custom_call.1} parent=1 // pred_fallthru
      _
    // Predicated region
    $region22: #{tpu_custom_call.1} parent=1 // pred_check
      _
    $region23: #{tpu_custom_call.1} parent=1 // pred_check_branch
      %251 = sbr.rel (0) target = $region25
    $region24: #{tpu_custom_call.1} parent=1 // pred_region
      %253 = dma.done [#allocation4], 512
    $region25: #{tpu_custom_call.1} parent=1 // pred_fallthru
      _
    %254 = vsyncpa [#allocation3], 1
    %255 = vsyncpa [#allocation6], 1
    %256 = vsyncpa [#allocation4], 1

</llo_original>
